<compile_context>
chip_gen: v6e
topology: v6e:2x2x1
jax: 0.10.0
libtpu: 0.0.40
codegen_flags: <defaults>
</compile_context>

<pallas_src>
import functools

import jax
import jax.numpy as jnp
from jax.experimental import pallas as pl
from jax.experimental.pallas import tpu as pltpu


def _round_up(x: int, m: int) -> int:
    return ((x + m - 1) // m) * m


def mlp_kernel(x_ref, w1_ref, b1_ref, w2_ref, b2_ref, o_ref):
    # x:  (3, T)   batch on the lane axis
    # w1: (32, 3)  PyTorch (out, in) layout
    # b1: (32, 1)
    # w2: (16, 32)
    # b2: (16, 1)
    # o:  (16, T)
    x = x_ref[...]
    w1 = w1_ref[...]

    # First linear layer: K=3 contraction as 3 broadcast multiply-adds on the
    # VPU (avoids pushing a nearly-empty matmul through the MXU).
    h = (w1[:, 0:1] * x[0:1, :]
         + w1[:, 1:2] * x[1:2, :]
         + w1[:, 2:3] * x[2:3, :]
         + b1_ref[...])                          # (32, T)

    # LeakyReLU with PyTorch default negative_slope=0.01.
    h = jnp.where(h > 0, h, 0.01 * h)

    # Dropout(0.3) in eval mode == identity.

    # Second linear layer on the MXU (f32 accumulate) + tanh epilogue (EUP).
    out = jnp.dot(w2_ref[...], h, preferred_element_type=jnp.float32) + b2_ref[...]
    o_ref[...] = jnp.tanh(out)                   # (16, T)


@functools.partial(jax.jit, static_argnames=("tile_n",))
def simple_mlp_forward(x, w1, b1, w2, b2, *, tile_n=16384):
    """Forward pass of SimpleMLP.

    Args:
      x:  (..., 3) input (PyTorch row-major convention; leading dims flattened).
      w1: (32, 3)  first Linear weight (PyTorch (out_features, in_features)).
      b1: (32,)    first Linear bias.
      w2: (16, 32) second Linear weight.
      b2: (16,)    second Linear bias.
      tile_n: batch tile size (lanes per grid step); clamped/rounded to 128.

    Returns:
      (..., 16) output, matching nn.Sequential(Linear, LeakyReLU, Dropout(eval),
      Linear, Tanh).
    """
    lead = x.shape[:-1]
    n = 1
    for d in lead:
        n *= int(d)
    x2 = x.reshape(n, 3)

    # Lane-dense tile: multiple of 128, no bigger than needed.
    tile_n = max(128, min(int(tile_n), _round_up(max(n, 1), 128)))
    tile_n = _round_up(tile_n, 128)
    n_pad = _round_up(max(n, 1), tile_n)

    # Layout plumbing (outside the kernel, fused by XLA under jit):
    # feature-major x padded to the tile grid, column-vector biases.
    x_t = jnp.zeros((3, n_pad), jnp.float32).at[:, :n].set(
        x2.T.astype(jnp.float32))
    b1_c = b1.reshape(32, 1).astype(jnp.float32)
    b2_c = b2.reshape(16, 1).astype(jnp.float32)

    grid = (n_pad // tile_n,)

    out_t = pl.pallas_call(
        mlp_kernel,
        out_shape=jax.ShapeDtypeStruct((16, n_pad), jnp.float32),
        grid=grid,
        in_specs=[
            # Activation stream: one (3, tile_n) slab per grid step.
            pl.BlockSpec((3, tile_n), lambda i: (0, i)),
            # Parameters: full arrays, constant index_map -> VMEM-resident.
            pl.BlockSpec((32, 3), lambda i: (0, 0)),
            pl.BlockSpec((32, 1), lambda i: (0, 0)),
            pl.BlockSpec((16, 32), lambda i: (0, 0)),
            pl.BlockSpec((16, 1), lambda i: (0, 0)),
        ],
        out_specs=pl.BlockSpec((16, tile_n), lambda i: (0, i)),
        compiler_params=pltpu.CompilerParams(
            dimension_semantics=("parallel",),
        ),
    )(x_t, w1.astype(jnp.float32), b1_c, w2.astype(jnp.float32), b2_c)

    return out_t[:, :n].T.reshape(*lead, 16)


def init_params(key):
    """Kaiming-normal (fan_in, leaky_relu) init, zero biases (PyTorch layout)."""
    k1, k2 = jax.random.split(key)
    gain = jnp.sqrt(2.0)  # kaiming_normal_(nonlinearity='leaky_relu', a=0)

    w1 = jax.random.normal(k1, (32, 3), jnp.float32) * (gain / jnp.sqrt(3.0))
    b1 = jnp.zeros((32,), jnp.float32)

    w2 = jax.random.normal(k2, (16, 32), jnp.float32) * (gain / jnp.sqrt(32.0))
    b2 = jnp.zeros((16,), jnp.float32)
    return w1, b1, w2, b2


def _reference(x, w1, b1, w2, b2):
    h = x @ w1.T + b1
    h = jnp.where(h > 0, h, 0.01 * h)
    return jnp.tanh(h @ w2.T + b2)


if __name__ == "__main__":
    key = jax.random.PRNGKey(0)
    k_x, k_p = jax.random.split(key)

    w1, b1, w2, b2 = init_params(k_p)

    # Small example: batch of 8 L2-normalized direction vectors (N, 3).
    x_small = jax.random.normal(k_x, (8, 3), jnp.float32)
    x_small = x_small / jnp.linalg.norm(x_small, axis=-1, keepdims=True)

    out_small = simple_mlp_forward(x_small, w1, b1, w2, b2)
    out_small = jax.block_until_ready(out_small)
    ref_small = _reference(x_small, w1, b1, w2, b2)
    assert out_small.shape == (8, 16)
    assert jnp.allclose(out_small, ref_small, atol=1e-5, rtol=1e-5)

    # Larger, non-multiple-of-tile batch to exercise the grid / padding path.
    x_big = jax.random.normal(k_x, (2500, 3), jnp.float32)
    x_big = x_big / jnp.linalg.norm(x_big, axis=-1, keepdims=True)
    out_big = simple_mlp_forward(x_big, w1, b1, w2, b2, tile_n=512)
    out_big = jax.block_until_ready(out_big)
    ref_big = _reference(x_big, w1, b1, w2, b2)
    assert out_big.shape == (2500, 16)
    assert jnp.allclose(out_big, ref_big, atol=1e-5, rtol=1e-5)

    print("KERNEL_OK")
</pallas_src>

<mosaic_0001>
module attributes {stable_mosaic.version = 11 : i64} {
  func.func @mlp_kernel(%arg0: i32, %arg1: memref<3x128xf32, #tpu.memory_space<vmem>>, %arg2: memref<32x3xf32, #tpu.memory_space<vmem>>, %arg3: memref<32x1xf32, #tpu.memory_space<vmem>>, %arg4: memref<16x32xf32, #tpu.memory_space<vmem>>, %arg5: memref<16x1xf32, #tpu.memory_space<vmem>>, %arg6: memref<16x128xf32, #tpu.memory_space<vmem>>) attributes {dimension_semantics = [#tpu.dimension_semantics<parallel>], iteration_bounds = array<i64: 1>, scalar_prefetch = 0 : i64, scratch_operands = 0 : i64, tpu.core_type = #tpu.core_type<tc>, window_params = [{transform_indices = @transform_0, window_bounds = array<i64: 3, 128>}, {pipeline_mode = #tpu.pipeline_mode<synchronous>, transform_indices = @transform_1, window_bounds = array<i64: 32, 3>}, {pipeline_mode = #tpu.pipeline_mode<synchronous>, transform_indices = @transform_2, window_bounds = array<i64: 32, 1>}, {pipeline_mode = #tpu.pipeline_mode<synchronous>, transform_indices = @transform_3, window_bounds = array<i64: 16, 32>}, {pipeline_mode = #tpu.pipeline_mode<synchronous>, transform_indices = @transform_4, window_bounds = array<i64: 16, 1>}, {transform_indices = @transform_5, window_bounds = array<i64: 16, 128>}]} {
    %c0 = arith.constant 0 : index
    %c0_0 = arith.constant 0 : index
    %0 = vector.load %arg1[%c0, %c0_0] : memref<3x128xf32, #tpu.memory_space<vmem>>, vector<3x128xf32>
    %c0_1 = arith.constant 0 : index
    %c0_2 = arith.constant 0 : index
    %1 = vector.load %arg2[%c0_1, %c0_2] : memref<32x3xf32, #tpu.memory_space<vmem>>, vector<32x3xf32>
    %2 = vector.extract_strided_slice %1 {offsets = [0, 0], sizes = [32, 1], strides = [1, 1]} : vector<32x3xf32> to vector<32x1xf32>
    %3 = vector.extract_strided_slice %0 {offsets = [0, 0], sizes = [1, 128], strides = [1, 1]} : vector<3x128xf32> to vector<1x128xf32>
    %4 = vector.broadcast %2 : vector<32x1xf32> to vector<32x128xf32>
    %5 = vector.broadcast %3 : vector<1x128xf32> to vector<32x128xf32>
    %6 = arith.mulf %4, %5 : vector<32x128xf32>
    %7 = vector.extract_strided_slice %1 {offsets = [0, 1], sizes = [32, 1], strides = [1, 1]} : vector<32x3xf32> to vector<32x1xf32>
    %8 = vector.extract_strided_slice %0 {offsets = [1, 0], sizes = [1, 128], strides = [1, 1]} : vector<3x128xf32> to vector<1x128xf32>
    %9 = vector.broadcast %7 : vector<32x1xf32> to vector<32x128xf32>
    %10 = vector.broadcast %8 : vector<1x128xf32> to vector<32x128xf32>
    %11 = arith.mulf %9, %10 : vector<32x128xf32>
    %12 = arith.addf %6, %11 : vector<32x128xf32>
    %13 = vector.extract_strided_slice %1 {offsets = [0, 2], sizes = [32, 1], strides = [1, 1]} : vector<32x3xf32> to vector<32x1xf32>
    %14 = vector.extract_strided_slice %0 {offsets = [2, 0], sizes = [1, 128], strides = [1, 1]} : vector<3x128xf32> to vector<1x128xf32>
    %15 = vector.broadcast %13 : vector<32x1xf32> to vector<32x128xf32>
    %16 = vector.broadcast %14 : vector<1x128xf32> to vector<32x128xf32>
    %17 = arith.mulf %15, %16 : vector<32x128xf32>
    %18 = arith.addf %12, %17 : vector<32x128xf32>
    %c0_3 = arith.constant 0 : index
    %c0_4 = arith.constant 0 : index
    %19 = vector.load %arg3[%c0_3, %c0_4] : memref<32x1xf32, #tpu.memory_space<vmem>>, vector<32x1xf32>
    %20 = vector.broadcast %19 : vector<32x1xf32> to vector<32x128xf32>
    %21 = arith.addf %18, %20 : vector<32x128xf32>
    %cst = arith.constant 0.000000e+00 : f32
    %22 = vector.broadcast %cst : f32 to vector<32x128xf32>
    %23 = arith.cmpf ogt, %21, %22 : vector<32x128xf32>
    %cst_5 = arith.constant 0.00999999977 : f32
    %24 = vector.broadcast %cst_5 : f32 to vector<32x128xf32>
    %25 = arith.mulf %24, %21 : vector<32x128xf32>
    %26 = arith.select %23, %21, %25 : vector<32x128xi1>, vector<32x128xf32>
    %c0_6 = arith.constant 0 : index
    %c0_7 = arith.constant 0 : index
    %27 = vector.load %arg4[%c0_6, %c0_7] : memref<16x32xf32, #tpu.memory_space<vmem>>, vector<16x32xf32>
    %cst_8 = arith.constant dense<0.000000e+00> : vector<16x128xf32>
    %28 = tpu.matmul %27, %26, %cst_8 {dimension_numbers = #tpu.dot_dimension_numbers<[1], [0], [0], [1], [0, 0, 1, 1], [], []>} : vector<16x32xf32>, vector<32x128xf32>, vector<16x128xf32> -> vector<16x128xf32>
    %c0_9 = arith.constant 0 : index
    %c0_10 = arith.constant 0 : index
    %29 = vector.load %arg5[%c0_9, %c0_10] : memref<16x1xf32, #tpu.memory_space<vmem>>, vector<16x1xf32>
    %30 = vector.broadcast %29 : vector<16x1xf32> to vector<16x128xf32>
    %31 = arith.addf %28, %30 : vector<16x128xf32>
    %32 = math.tanh %31 : vector<16x128xf32>
    %c0_11 = arith.constant 0 : index
    %c0_12 = arith.constant 0 : index
    %33 = vector.load %arg6[%c0_11, %c0_12] : memref<16x128xf32, #tpu.memory_space<vmem>>, vector<16x128xf32>
    tpu.vector_store %arg6[%c0_11, %c0_12], %32 {strides = array<i32>} : memref<16x128xf32, #tpu.memory_space<vmem>>, vector<16x128xf32>,
    return
  }
  func.func @transform_0(%arg0: i32) -> (i32, i32) {
    %c0_i32 = arith.constant 0 : i32
    %c0_i32_0 = arith.constant 0 : i32
    return %c0_i32, %arg0 : i32, i32
  }
  func.func @transform_1(%arg0: i32) -> (i32, i32) {
    %c0_i32 = arith.constant 0 : i32
    %c0_i32_0 = arith.constant 0 : i32
    %c0_i32_1 = arith.constant 0 : i32
    return %c0_i32, %c0_i32_0 : i32, i32
  }
  func.func @transform_2(%arg0: i32) -> (i32, i32) {
    %c0_i32 = arith.constant 0 : i32
    %c0_i32_0 = arith.constant 0 : i32
    %c0_i32_1 = arith.constant 0 : i32
    return %c0_i32, %c0_i32_0 : i32, i32
  }
  func.func @transform_3(%arg0: i32) -> (i32, i32) {
    %c0_i32 = arith.constant 0 : i32
    %c0_i32_0 = arith.constant 0 : i32
    %c0_i32_1 = arith.constant 0 : i32
    return %c0_i32, %c0_i32_0 : i32, i32
  }
  func.func @transform_4(%arg0: i32) -> (i32, i32) {
    %c0_i32 = arith.constant 0 : i32
    %c0_i32_0 = arith.constant 0 : i32
    %c0_i32_1 = arith.constant 0 : i32
    return %c0_i32, %c0_i32_0 : i32, i32
  }
  func.func @transform_5(%arg0: i32) -> (i32, i32) {
    %c0_i32 = arith.constant 0 : i32
    %c0_i32_0 = arith.constant 0 : i32
    return %c0_i32, %arg0 : i32, i32
  }
}

</mosaic_0001>

<llo_original>
// kernel: simple_mlp_forward.1
$region0: #{simple_mlp_forward.1}
  #allocation0 [shape = 'u32[]', space=smem, size = 0x4, offset = 0x4, fixed_abs, tag = 'smem constant byte address 0x4 - core index']
  #allocation1 [shape = 'u32[144,128]{1,0:T(1,128)}', space=vmem, size = 0x12000, scoped, tag = 'internal scratch']
  %s0 = inlined_call_operand.vmem [shape: f32[3,128], index: 0, kind: input, shape index: {}]
  %s1 = inlined_call_operand.vmem [shape: f32[32,3], index: 1, kind: input, shape index: {}]
  %s2 = inlined_call_operand.vmem [shape: f32[32,1], index: 2, kind: input, shape index: {}]
  %s3 = inlined_call_operand.vmem [shape: f32[16,32], index: 3, kind: input, shape index: {}]
  %s4 = inlined_call_operand.vmem [shape: f32[16,1], index: 4, kind: input, shape index: {}]
  %s5 = inlined_call_operand.vmem [shape: f32[16,128], index: 5, kind: output, shape index: {}]
  %s6 = sld [smem:[#allocation0]]
  $region30: #{simple_mlp_forward.1} parent=0
    _
  %s8 = ssub.s32 1, %s6
  %s9 = scalar_select 0, %s8, %s6
  // Predicated region
  $region2: #{simple_mlp_forward.1} parent=0 // pred_check
    _
  $region3: #{simple_mlp_forward.1} parent=0 // pred_check_branch
    %11 = sbr.rel (0) target = $region5
  $region4: #{simple_mlp_forward.1} parent=0 // pred_region
    _
  $region5: #{simple_mlp_forward.1} parent=0 // pred_fallthru
    _
  // Predicated region
  $region6: #{simple_mlp_forward.1} parent=0 // pred_check
    _
  $region7: #{simple_mlp_forward.1} parent=0 // pred_check_branch
    %13 = sbr.rel (0) target = $region9
  $region8: #{simple_mlp_forward.1} parent=0 // pred_region
    _
  $region9: #{simple_mlp_forward.1} parent=0 // pred_fallthru
    _
  // Predicated region
  $region10: #{simple_mlp_forward.1} parent=0 // pred_check
    _
  $region11: #{simple_mlp_forward.1} parent=0 // pred_check_branch
    %15 = sbr.rel (0) target = $region13
  $region12: #{simple_mlp_forward.1} parent=0 // pred_region
    _
  $region13: #{simple_mlp_forward.1} parent=0 // pred_fallthru
    _
  // Predicated region
  $region14: #{simple_mlp_forward.1} parent=0 // pred_check
    _
  $region15: #{simple_mlp_forward.1} parent=0 // pred_check_branch
    %17 = sbr.rel (0) target = $region17
  $region16: #{simple_mlp_forward.1} parent=0 // pred_region
    _
  $region17: #{simple_mlp_forward.1} parent=0 // pred_fallthru
    _
  // Predicated region
  $region18: #{simple_mlp_forward.1} parent=0 // pred_check
    _
  $region19: #{simple_mlp_forward.1} parent=0 // pred_check_branch
    %19 = sbr.rel (0) target = $region21
  $region20: #{simple_mlp_forward.1} parent=0 // pred_region
    _
  $region21: #{simple_mlp_forward.1} parent=0 // pred_fallthru
    _
  %v20 = vld [vmem:[%s0] sm:$0x7]
  %v21 = vld [vmem:[%s1] sm:$0xff]
  %v22 = vld [vmem:[%s1 + $0x8] sm:$0xff]
  %v23 = vld [vmem:[%s1 + $0x10] sm:$0xff]
  %v24 = vld [vmem:[%s1 + $0x18] sm:$0xff]
  %26 = vset.pattern.permute.xlu0 0
  %27 = vperm.xlu0 %26, %v21
  %v28 = vpop.permute.xlu0 %27
  %31 = vset.pattern.permute.xlu0 0
  %32 = vperm.xlu0 %31, %v22
  %v33 = vpop.permute.xlu0 %32
  %36 = vset.pattern.permute.xlu0 0
  %37 = vperm.xlu0 %36, %v23
  %v38 = vpop.permute.xlu0 %37
  %41 = vset.pattern.permute.xlu0 0
  %42 = vperm.xlu0 %41, %v24
  %v43 = vpop.permute.xlu0 %42
  %v45 = vlaneseq
  %v46 = vshrl.u32 %v45, 7
  %v47 = vsub.s32 0, %v46
  %v48 = vrot.slane %v20, %v47
  %v49 = vmul.f32 %v28, %v48
  %v50 = vmul.f32 %v33, %v48
  %v51 = vmul.f32 %v38, %v48
  %v52 = vmul.f32 %v43, %v48
  %53 = vset.pattern.permute.xlu0 1
  %54 = vperm.xlu0 %53, %v21
  %v55 = vpop.permute.xlu0 %54
  %57 = vset.pattern.permute.xlu0 1
  %58 = vperm.xlu0 %57, %v22
  %v59 = vpop.permute.xlu0 %58
  %61 = vset.pattern.permute.xlu0 1
  %62 = vperm.xlu0 %61, %v23
  %v63 = vpop.permute.xlu0 %62
  %65 = vset.pattern.permute.xlu0 1
  %66 = vperm.xlu0 %65, %v24
  %v67 = vpop.permute.xlu0 %66
  %v69 = vlaneseq
  %v70 = vshrl.u32 %v69, 7
  %v71 = vsub.s32 1, %v70
  %v72 = vrot.slane %v20, %v71
  %v73 = vmul.f32 %v55, %v72
  %v74 = vmul.f32 %v59, %v72
  %v75 = vmul.f32 %v63, %v72
  %v76 = vmul.f32 %v67, %v72
  %v77 = vadd.f32 %v49, %v73
  %v78 = vadd.f32 %v50, %v74
  %v79 = vadd.f32 %v51, %v75
  %v80 = vadd.f32 %v52, %v76
  %81 = vset.pattern.permute.xlu0 2
  %82 = vperm.xlu0 %81, %v21
  %v83 = vpop.permute.xlu0 %82
  %85 = vset.pattern.permute.xlu0 2
  %86 = vperm.xlu0 %85, %v22
  %v87 = vpop.permute.xlu0 %86
  %89 = vset.pattern.permute.xlu0 2
  %90 = vperm.xlu0 %89, %v23
  %v91 = vpop.permute.xlu0 %90
  %93 = vset.pattern.permute.xlu0 2
  %94 = vperm.xlu0 %93, %v24
  %v95 = vpop.permute.xlu0 %94
  %v97 = vlaneseq
  %v98 = vshrl.u32 %v97, 7
  %v99 = vsub.s32 2, %v98
  %v100 = vrot.slane %v20, %v99
  %v101 = vmul.f32 %v83, %v100
  %v102 = vmul.f32 %v87, %v100
  %v103 = vmul.f32 %v91, %v100
  %v104 = vmul.f32 %v95, %v100
  %v105 = vadd.f32 %v77, %v101
  %v106 = vadd.f32 %v78, %v102
  %v107 = vadd.f32 %v79, %v103
  %v108 = vadd.f32 %v80, %v104
  %v109 = vld [vmem:[%s2] sm:$0xff]
  %v110 = vld [vmem:[%s2 + $0x8] sm:$0xff]
  %v111 = vld [vmem:[%s2 + $0x10] sm:$0xff]
  %v112 = vld [vmem:[%s2 + $0x18] sm:$0xff]
  %114 = vset.pattern.permute.xlu0 0
  %115 = vperm.xlu0 %114, %v109
  %v116 = vpop.permute.xlu0 %115
  %119 = vset.pattern.permute.xlu0 0
  %120 = vperm.xlu0 %119, %v110
  %v121 = vpop.permute.xlu0 %120
  %124 = vset.pattern.permute.xlu0 0
  %125 = vperm.xlu0 %124, %v111
  %v126 = vpop.permute.xlu0 %125
  %129 = vset.pattern.permute.xlu0 0
  %130 = vperm.xlu0 %129, %v112
  %v131 = vpop.permute.xlu0 %130
  %v133 = vadd.f32 %v105, %v116
  %v134 = vadd.f32 %v106, %v121
  %v135 = vadd.f32 %v107, %v126
  %v136 = vadd.f32 %v108, %v131
  %vm137 = vcmp.gt.f32.partialorder %v133, 0.0
  %vm138 = vcmp.gt.f32.partialorder %v134, 0.0
  %vm139 = vcmp.gt.f32.partialorder %v135, 0.0
  %vm140 = vcmp.gt.f32.partialorder %v136, 0.0
  %v141 = vmul.f32 %v133, 0.01
  %v142 = vmul.f32 %v134, 0.01
  %v143 = vmul.f32 %v135, 0.01
  %v144 = vmul.f32 %v136, 0.01
  %v145 = vsel %vm137, %v133, %v141
  %v146 = vsel %vm138, %v134, %v142
  %v147 = vsel %vm139, %v135, %v143
  %v148 = vsel %vm140, %v136, %v144
  %v149 = vld [vmem:[%s3] sm:$0xff]
  %v150 = vld [vmem:[%s3 + $0x8] sm:$0xff]
  %v151 = vld [vmem:[%s4] sm:$0xff]
  %v152 = vld [vmem:[%s4 + $0x8] sm:$0xff]
  %154 = vset.pattern.permute.xlu0 0
  %155 = vperm.xlu0 %154, %v151
  %v156 = vpop.permute.xlu0 %155
  %159 = vset.pattern.permute.xlu0 0
  %160 = vperm.xlu0 %159, %v152
  %v161 = vpop.permute.xlu0 %160
  %vm163 = vcmask 261120
  %v165 = vsel %vm163, %v149, 0
  %v168 = vsel %vm163, %v150, 0
  %170 = vmatprep.subr.mxu0 0.0
  %171 = vmatpush1.msra.mxu0 0.0
  %172 = vmatprep.subr.mxu0 0.0
  %173 = vmatpush1.msra.mxu0 0.0
  %174 = vmatprep.subr.mxu0 0.0
  %175 = vmatpush1.msra.mxu0 0.0
  %176 = vmatprep.subr.mxu0 0.0
  %177 = vmatpush1.msra.mxu0 0.0
  %178 = vmatprep.subr.mxu0 0.0
  %179 = vmatpush1.msra.mxu0 0.0
  %180 = vmatprep.subr.mxu0 0.0
  %181 = vmatpush1.msra.mxu0 0.0
  %182 = vmatprep.subr.mxu0 0.0
  %183 = vmatpush1.msra.mxu0 0.0
  %184 = vmatprep.subr.mxu0 0.0
  %185 = vmatpush1.msra.mxu0 0.0
  %186 = vmatprep.subr.mxu0 0.0
  %187 = vmatpush1.msra.mxu0 0.0
  %188 = vmatprep.subr.mxu0 0.0
  %189 = vmatpush1.msra.mxu0 0.0
  %190 = vmatprep.subr.mxu0 0.0
  %191 = vmatpush1.msra.mxu0 0.0
  %192 = vmatprep.subr.mxu0 0.0
  %193 = vmatpush1.msra.mxu0 0.0
  %194 = vmatprep.subr.mxu0 0.0
  %195 = vmatpush1.msra.mxu0 %v148
  %196 = vmatprep.subr.mxu0 0.0
  %197 = vmatpush1.msra.mxu0 %v147
  %198 = vmatprep.subr.mxu0 0.0
  %199 = vmatpush1.msra.mxu0 %v146
  %200 = vmatprep.subr.mxu0 0.0
  %201 = vmatpush1.msra.mxu0 %v145
  %202 = vmatprep.subr.mxu0 0.0
  %203 = vmatpush2.msra.mxu0 0.0
  %204 = vmatprep.subr.mxu0 0.0
  %205 = vmatpush2.msra.mxu0 0.0
  %206 = vmatprep.subr.mxu0 0.0
  %207 = vmatpush2.msra.mxu0 0.0
  %208 = vmatprep.subr.mxu0 0.0
  %209 = vmatpush2.msra.mxu0 0.0
  %210 = vmatprep.subr.mxu0 0.0
  %211 = vmatpush2.msra.mxu0 0.0
  %212 = vmatprep.subr.mxu0 0.0
  %213 = vmatpush2.msra.mxu0 0.0
  %214 = vmatprep.subr.mxu0 0.0
  %215 = vmatpush2.msra.mxu0 0.0
  %216 = vmatprep.subr.mxu0 0.0
  %217 = vmatpush2.msra.mxu0 0.0
  %218 = vmatprep.subr.mxu0 0.0
  %219 = vmatpush2.msra.mxu0 0.0
  %220 = vmatprep.subr.mxu0 0.0
  %221 = vmatpush2.msra.mxu0 0.0
  %222 = vmatprep.subr.mxu0 0.0
  %223 = vmatpush2.msra.mxu0 0.0
  %224 = vmatprep.subr.mxu0 0.0
  %225 = vmatpush2.msra.mxu0 0.0
  %226 = vmatprep.subr.mxu0 0.0
  %227 = vmatpush2.msra.mxu0 0.0
  %228 = vmatprep.subr.mxu0 0.0
  %229 = vmatpush2.msra.mxu0 0.0
  %230 = vmatprep.subr.mxu0 0.0
  %231 = vmatpush2.msra.mxu0 0.0
  %232 = vmatprep.subr.mxu0 0.0
  %233 = vmatpush2.msra.mxu0 0.0
  %234 = vmatprep.mubr.f32.mxu0 0.0
  %235 = vmatmul.mubr.f32.gmra.mxu0 %v165
  %v236 = vpop.f32.mrf.mxu0
  %v237 = vadd.f32 %v156, %v236
  %v238 = vpop.f32.mrf.mxu0
  %239 = vmatprep.mubr.f32.mxu0 0.0
  %240 = vmatmul.mubr.f32.gmra.mxu0 %v168
  %v241 = vpop.f32.mrf.mxu0
  %v242 = vadd.f32 %v161, %v241
  %v243 = vpop.f32.mrf.mxu0
  %244 = vdwg.mxu0
  %v245 = vtanh.pop %v237
  %v246 = vtanh.pop %v242
  %247 = vst [vmem:[%s5] sm:$0xff] %v245
  %248 = vst [vmem:[%s5 + $0x8] sm:$0xff] %v246
  // Predicated region
  $region22: #{simple_mlp_forward.1} parent=0 // pred_check
    _
  $region23: #{simple_mlp_forward.1} parent=0 // pred_check_branch
    %250 = sbr.rel (0) target = $region25
  $region24: #{simple_mlp_forward.1} parent=0 // pred_region
    _
  $region25: #{simple_mlp_forward.1} parent=0 // pred_fallthru
    _
  // Predicated region
  $region26: #{simple_mlp_forward.1} parent=0 // pred_check
    _
  $region27: #{simple_mlp_forward.1} parent=0 // pred_check_branch
    %252 = sbr.rel (0) target = $region29
  $region28: #{simple_mlp_forward.1} parent=0 // pred_region
    _
  $region29: #{simple_mlp_forward.1} parent=0 // pred_fallthru
    _

</llo_original>
